<compile_context>
chip_gen: v7x
topology: tpu7x:2x2x1
jax: 0.10.0
libtpu: 0.0.40
codegen_flags: <defaults>
</compile_context>

<pallas_src>
import functools

import jax
import jax.numpy as jnp
from jax.experimental import pallas as pl
from jax.experimental.pallas import tpu as pltpu

H1, H2 = 400, 300          # logical hidden widths from the PyTorch module
LANE = 128
SUBLANE = 8


def _round_up(n, m):
    return (n + m - 1) // m * m


def actor_mlp_kernel(x_ref, w1_ref, w2_ref, w3_ref, b_ref, out_ref):
    """out = tanh(tanh(x @ W1 + b1) @ W2 + b2) @ W3 + b3 (all padded/lane-aligned).

    Weights are bf16; all matmuls accumulate in f32 on the MXU; bias adds and
    tanh run in f32 on the VPU/EUP.
    """
    h2p = w2_ref.shape[1]      # padded hidden-2 width (384)
    ap = w3_ref.shape[1]       # padded action width (128)

    x = x_ref[...].astype(jnp.bfloat16)
    b = b_ref[...]             # (SUBLANE, h1p) f32; row 0=b1, row 1=b2, row 2=b3

    # layer 1: tanh(x @ W1 + b1)
    z1 = jnp.dot(x, w1_ref[...], preferred_element_type=jnp.float32) + b[0:1, :]
    h1 = jnp.tanh(z1)

    # layer 2: tanh(h1 @ W2 + b2)
    z2 = (jnp.dot(h1.astype(jnp.bfloat16), w2_ref[...],
                  preferred_element_type=jnp.float32)
          + b[1:2, :h2p])
    h2 = jnp.tanh(z2)

    # actor head: h2 @ W3 + b3   (no activation, matches PyTorch forward)
    out = (jnp.dot(h2.astype(jnp.bfloat16), w3_ref[...],
                   preferred_element_type=jnp.float32)
           + b[2:3, :ap])
    out_ref[...] = out.astype(out_ref.dtype)


def pack_params(w1, b1, w2, b2, w3, b3):
    """Pack PyTorch-layout f32 params (w_i: [out, in], b_i: [out]) into
    lane-padded bf16 weights (pre-transposed to [in, out]) plus one f32 bias
    block.  Done once, off the hot path."""
    state_dim = w1.shape[1]
    action_dim = w3.shape[0]
    sp = _round_up(state_dim, 16)       # bf16 sublane packing
    h1p = _round_up(H1, LANE)           # 512
    h2p = _round_up(H2, LANE)           # 384
    ap = _round_up(action_dim, LANE)    # 128

    def pad2(a, rows, cols):
        return jnp.pad(a, ((0, rows - a.shape[0]), (0, cols - a.shape[1])))

    w1p = pad2(w1.T, sp, h1p).astype(jnp.bfloat16)     # [sp, 512]
    w2p = pad2(w2.T, h1p, h2p).astype(jnp.bfloat16)    # [512, 384]
    w3p = pad2(w3.T, h2p, ap).astype(jnp.bfloat16)     # [384, 128]

    # all three biases in one small f32 block: row 0 = b1, row 1 = b2, row 2 = b3
    b_pack = jnp.zeros((SUBLANE, h1p), jnp.float32)
    b_pack = b_pack.at[0, :H1].set(b1)
    b_pack = b_pack.at[1, :H2].set(b2)
    b_pack = b_pack.at[2, :action_dim].set(b3)
    return w1p, w2p, w3p, b_pack


@functools.partial(jax.jit, static_argnames=("action_dim",))
def actor_mlp_forward(x, w1p, w2p, w3p, b_pack, *, action_dim):
    """x: [B, state_dim] f32; packed params from pack_params(). Returns [B, action_dim]."""
    B, state_dim = x.shape
    sp = w1p.shape[0]
    ap = w3p.shape[1]
    bp = _round_up(B, SUBLANE)

    # pad batch to a sublane multiple and state to the packed W1 row count
    x_pad = jnp.pad(x, ((0, bp - B), (0, sp - state_dim)))

    vmem = pl.BlockSpec(memory_space=pltpu.MemorySpace.VMEM)

    flops = 2 * B * (state_dim * H1 + H1 * H2 + H2 * action_dim)
    transcendentals = B * (H1 + H2)
    bytes_accessed = (x_pad.size * 4 + w1p.size * 2 + w2p.size * 2
                      + w3p.size * 2 + b_pack.size * 4 + bp * ap * 4)

    out_pad = pl.pallas_call(
        actor_mlp_kernel,
        out_shape=jax.ShapeDtypeStruct((bp, ap), jnp.float32),
        in_specs=[vmem, vmem, vmem, vmem, vmem],
        out_specs=vmem,
        cost_estimate=pl.CostEstimate(
            flops=flops,
            transcendentals=transcendentals,
            bytes_accessed=bytes_accessed),
    )(x_pad, w1p, w2p, w3p, b_pack)

    # slice the padded output back to the logical shape
    return out_pad[:B, :action_dim]

    # TODO(synk): if batch ever grows large, add a ("parallel",) grid over batch
    # tiles with constant index_maps for the weights (weights stay resident
    # across tiles, grid axis shards across the 2 TCs on v7x); at B=2 a grid
    # would only add per-step overhead.


def reference_forward(x, w1, b1, w2, b2, w3, b3):
    """Pure-JAX f32 reference with original (unpadded, PyTorch-layout) params."""
    h1 = jnp.tanh(x @ w1.T + b1)
    h2 = jnp.tanh(h1 @ w2.T + b2)
    return h2 @ w3.T + b3


if __name__ == "__main__":
    key = jax.random.PRNGKey(0)
    k_x, k_p = jax.random.split(key)

    batch, state_dim, action_dim = 2, 8, 4
    x = jax.random.normal(k_x, (batch, state_dim), jnp.float32)

    ks = jax.random.split(k_p, 6)
    # PyTorch nn.Linear layout: weight [out, in], bias [out]
    w1 = jax.random.normal(ks[0], (H1, state_dim), jnp.float32) * 0.05
    b1 = jax.random.normal(ks[1], (H1,), jnp.float32) * 0.05
    w2 = jax.random.normal(ks[2], (H2, H1), jnp.float32) * 0.05
    b2 = jax.random.normal(ks[3], (H2,), jnp.float32) * 0.05
    w3 = jax.random.normal(ks[4], (action_dim, H2), jnp.float32) * 0.05
    b3 = jax.random.normal(ks[5], (action_dim,), jnp.float32) * 0.05
    # NOTE: the module's log_std parameter is unused in forward(); not materialized.

    packed = pack_params(w1, b1, w2, b2, w3, b3)

    out = actor_mlp_forward(x, *packed, action_dim=action_dim)
    out = jax.block_until_ready(out)

    ref = reference_forward(x, w1, b1, w2, b2, w3, b3)
    assert out.shape == (batch, action_dim)
    # bf16 weights / bf16 dot inputs with f32 accumulation -> looser tolerance
    assert jnp.allclose(out, ref, atol=2e-2, rtol=2e-2), (
        "mismatch vs pure-JAX f32 reference")

    print("KERNEL_OK")
</pallas_src>

<mosaic_0001>
module attributes {stable_mosaic.version = 11 : i64} {
  func.func @actor_mlp_kernel(%arg0: memref<8x16xf32, #tpu.memory_space<vmem>>, %arg1: memref<16x512xbf16, #tpu.memory_space<vmem>>, %arg2: memref<512x384xbf16, #tpu.memory_space<vmem>>, %arg3: memref<384x128xbf16, #tpu.memory_space<vmem>>, %arg4: memref<8x512xf32, #tpu.memory_space<vmem>>, %arg5: memref<8x128xf32, #tpu.memory_space<vmem>>) attributes {dimension_semantics = [], scalar_prefetch = 0 : i64, scratch_operands = 0 : i64, tpu.core_type = #tpu.core_type<tc>} {
    %c0 = arith.constant 0 : index
    %c0_0 = arith.constant 0 : index
    %0 = vector.load %arg0[%c0, %c0_0] : memref<8x16xf32, #tpu.memory_space<vmem>>, vector<8x16xf32>
    %1 = arith.truncf %0 : vector<8x16xf32> to vector<8x16xbf16>
    %c0_1 = arith.constant 0 : index
    %c0_2 = arith.constant 0 : index
    %2 = vector.load %arg4[%c0_1, %c0_2] : memref<8x512xf32, #tpu.memory_space<vmem>>, vector<8x512xf32>
    %c0_3 = arith.constant 0 : index
    %c0_4 = arith.constant 0 : index
    %3 = vector.load %arg1[%c0_3, %c0_4] : memref<16x512xbf16, #tpu.memory_space<vmem>>, vector<16x512xbf16>
    %cst = arith.constant dense<0.000000e+00> : vector<8x512xf32>
    %4 = tpu.matmul %1, %3, %cst {dimension_numbers = #tpu.dot_dimension_numbers<[1], [0], [0], [1], [0, 0, 1, 1], [], []>} : vector<8x16xbf16>, vector<16x512xbf16>, vector<8x512xf32> -> vector<8x512xf32>
    %5 = vector.extract_strided_slice %2 {offsets = [0, 0], sizes = [1, 512], strides = [1, 1]} : vector<8x512xf32> to vector<1x512xf32>
    %6 = vector.broadcast %5 : vector<1x512xf32> to vector<8x512xf32>
    %7 = arith.addf %4, %6 : vector<8x512xf32>
    %8 = math.tanh %7 : vector<8x512xf32>
    %9 = arith.truncf %8 : vector<8x512xf32> to vector<8x512xbf16>
    %c0_5 = arith.constant 0 : index
    %c0_6 = arith.constant 0 : index
    %10 = vector.load %arg2[%c0_5, %c0_6] : memref<512x384xbf16, #tpu.memory_space<vmem>>, vector<512x384xbf16>
    %cst_7 = arith.constant dense<0.000000e+00> : vector<8x384xf32>
    %11 = tpu.matmul %9, %10, %cst_7 {dimension_numbers = #tpu.dot_dimension_numbers<[1], [0], [0], [1], [0, 0, 1, 1], [], []>} : vector<8x512xbf16>, vector<512x384xbf16>, vector<8x384xf32> -> vector<8x384xf32>
    %12 = vector.extract_strided_slice %2 {offsets = [1, 0], sizes = [1, 384], strides = [1, 1]} : vector<8x512xf32> to vector<1x384xf32>
    %13 = vector.broadcast %12 : vector<1x384xf32> to vector<8x384xf32>
    %14 = arith.addf %11, %13 : vector<8x384xf32>
    %15 = math.tanh %14 : vector<8x384xf32>
    %16 = arith.truncf %15 : vector<8x384xf32> to vector<8x384xbf16>
    %c0_8 = arith.constant 0 : index
    %c0_9 = arith.constant 0 : index
    %17 = vector.load %arg3[%c0_8, %c0_9] : memref<384x128xbf16, #tpu.memory_space<vmem>>, vector<384x128xbf16>
    %cst_10 = arith.constant dense<0.000000e+00> : vector<8x128xf32>
    %18 = tpu.matmul %16, %17, %cst_10 {dimension_numbers = #tpu.dot_dimension_numbers<[1], [0], [0], [1], [0, 0, 1, 1], [], []>} : vector<8x384xbf16>, vector<384x128xbf16>, vector<8x128xf32> -> vector<8x128xf32>
    %19 = vector.extract_strided_slice %2 {offsets = [2, 0], sizes = [1, 128], strides = [1, 1]} : vector<8x512xf32> to vector<1x128xf32>
    %20 = vector.broadcast %19 : vector<1x128xf32> to vector<8x128xf32>
    %21 = arith.addf %18, %20 : vector<8x128xf32>
    %c0_11 = arith.constant 0 : index
    %c0_12 = arith.constant 0 : index
    %22 = vector.load %arg5[%c0_11, %c0_12] : memref<8x128xf32, #tpu.memory_space<vmem>>, vector<8x128xf32>
    tpu.vector_store %arg5[%c0_11, %c0_12], %21 {strides = array<i32>} : memref<8x128xf32, #tpu.memory_space<vmem>>, vector<8x128xf32>,
    return
  }
}

</mosaic_0001>

<llo_original>
// kernel: actor_mlp_forward.1
$region0: #{actor_mlp_forward.1}
  #allocation0 [shape = 'u32[]', space=smem, size = 0x4, offset = 0x4, fixed_abs, tag = 'smem constant byte address 0x4 - core index']
  #allocation1 [shape = 'u32[144,128]{1,0:T(1,128)}', space=vmem, size = 0x12000, scoped, tag = 'internal scratch']
  %s0 = inlined_call_operand.vmem [shape: f32[8,16], index: 0, kind: input, shape index: {}]
  %s1 = inlined_call_operand.hbm [shape: bf16[16,512], index: 1, kind: input, shape index: {}]
  %s2 = inlined_call_operand.hbm [shape: bf16[512,384], index: 2, kind: input, shape index: {}]
  %s3 = inlined_call_operand.hbm [shape: bf16[384,128], index: 3, kind: input, shape index: {}]
  %s4 = inlined_call_operand.hbm [shape: f32[8,512], index: 4, kind: input, shape index: {}]
  %s5 = inlined_call_operand.vmem [shape: f32[8,128], index: 5, kind: output, shape index: {}]
  %s6 = sld [smem:[#allocation0]]
  $region46: #{actor_mlp_forward.1} parent=0
    _
  %s8 = ssub.s32 1, %s6
  %s9 = scalar_select 0, %s8, %s6
  $region1: #{actor_mlp_forward.1} parent=0
    #allocation2 [shape = 'u8[16384]{0}', space=vmem, size = 0x4000, scoped, tag = 'input window, operand 1, single buffered']
    #allocation3 [shape = 's32[1]{0}', space=sflag, size = 0x4, scoped, tag = 'scoped memory for actor_mlp_forward.1']
    #allocation4 [shape = 'u8[393216]{0}', space=vmem, size = 0x60000, scoped, tag = 'input window, operand 2, single buffered']
    #allocation5 [shape = 's32[1]{0}', space=sflag, size = 0x4, scoped, tag = 'scoped memory for actor_mlp_forward.1']
    #allocation6 [shape = 'u8[98304]{0}', space=vmem, size = 0x18000, scoped, tag = 'input window, operand 3, single buffered']
    #allocation7 [shape = 'u8[16384]{0}', space=vmem, size = 0x4000, scoped, tag = 'input window, operand 4, single buffered']
    #allocation8 [shape = 's32[1]{0}', space=sflag, size = 0x4, scoped, tag = 'scoped memory for actor_mlp_forward.1']
    %10 = vsyncpa [#allocation3], 0
    %11 = vsyncpa [#allocation5], 0
    %12 = vsyncpa [#allocation8], 0
    // Predicated region
    $region2: #{actor_mlp_forward.1} parent=1 // pred_check
      _
    $region3: #{actor_mlp_forward.1} parent=1 // pred_check_branch
      %14 = sbr.rel (0) target = $region5
    $region4: #{actor_mlp_forward.1} parent=1 // pred_region
      _
    $region5: #{actor_mlp_forward.1} parent=1 // pred_fallthru
      _
    // Predicated region
    $region6: #{actor_mlp_forward.1} parent=1 // pred_check
      _
    $region7: #{actor_mlp_forward.1} parent=1 // pred_check_branch
      %16 = sbr.rel (0) target = $region9
    $region8: #{actor_mlp_forward.1} parent=1 // pred_region
      %s18 = ssub.s32 512, 512
      %19 = vsyncadd [#allocation3], %s18
      %s20 = sshll.u32 [#allocation2], 4
      %s21 = int_to_ptr.vmem [resolvable:$true] %s20
      %26 = dma.hbm_to_vmem [thread:$0]  %s1, 512, %s21, [#allocation3], 256, 256, 16
    $region9: #{actor_mlp_forward.1} parent=1 // pred_fallthru
      _
    // Predicated region
    $region10: #{actor_mlp_forward.1} parent=1 // pred_check
      _
    $region11: #{actor_mlp_forward.1} parent=1 // pred_check_branch
      %28 = sbr.rel (0) target = $region13
    $region12: #{actor_mlp_forward.1} parent=1 // pred_region
      %s30 = ssub.s32 12288, 12288
      %31 = vsyncadd [#allocation5], %s30
      %s32 = sshll.u32 [#allocation4], 4
      %s33 = int_to_ptr.vmem [resolvable:$true] %s32
      %38 = dma.hbm_to_vmem [thread:$0]  %s2, 12288, %s33, [#allocation5], 192, 192, 12
    $region13: #{actor_mlp_forward.1} parent=1 // pred_fallthru
      _
    // Predicated region
    $region14: #{actor_mlp_forward.1} parent=1 // pred_check
      _
    $region15: #{actor_mlp_forward.1} parent=1 // pred_check_branch
      %40 = sbr.rel (0) target = $region17
    $region16: #{actor_mlp_forward.1} parent=1 // pred_region
      %s42 = ssub.s32 3072, 3072
      %43 = vsyncadd [#allocation5], %s42
      %s44 = sshll.u32 [#allocation6], 4
      %s45 = int_to_ptr.vmem [resolvable:$true] %s44
      %50 = dma.hbm_to_vmem [thread:$0]  %s3, 3072, %s45, [#allocation5], 64, 64, 4
    $region17: #{actor_mlp_forward.1} parent=1 // pred_fallthru
      _
    // Predicated region
    $region18: #{actor_mlp_forward.1} parent=1 // pred_check
      _
    $region19: #{actor_mlp_forward.1} parent=1 // pred_check_branch
      %52 = sbr.rel (0) target = $region21
    $region20: #{actor_mlp_forward.1} parent=1 // pred_region
      %s54 = ssub.s32 512, 512
      %55 = vsyncadd [#allocation8], %s54
      %s57 = sshll.u32 [#allocation7], 4
      %s58 = int_to_ptr.vmem [resolvable:$true] %s57
      %60 = dma.hbm_to_vmem [thread:$0]  %s4, 512, %s58, [#allocation8]
    $region21: #{actor_mlp_forward.1} parent=1 // pred_fallthru
      _
    // Predicated region
    $region22: #{actor_mlp_forward.1} parent=1 // pred_check
      _
    $region23: #{actor_mlp_forward.1} parent=1 // pred_check_branch
      %62 = sbr.rel (0) target = $region25
    $region24: #{actor_mlp_forward.1} parent=1 // pred_region
      %63 = dma.done [#allocation3], 512
    $region25: #{actor_mlp_forward.1} parent=1 // pred_fallthru
      _
    // Predicated region
    $region26: #{actor_mlp_forward.1} parent=1 // pred_check
      _
    $region27: #{actor_mlp_forward.1} parent=1 // pred_check_branch
      %65 = sbr.rel (0) target = $region29
    $region28: #{actor_mlp_forward.1} parent=1 // pred_region
      %66 = dma.done [#allocation5], 12288
    $region29: #{actor_mlp_forward.1} parent=1 // pred_fallthru
      _
    // Predicated region
    $region30: #{actor_mlp_forward.1} parent=1 // pred_check
      _
    $region31: #{actor_mlp_forward.1} parent=1 // pred_check_branch
      %68 = sbr.rel (0) target = $region33
    $region32: #{actor_mlp_forward.1} parent=1 // pred_region
      %69 = dma.done [#allocation5], 3072
    $region33: #{actor_mlp_forward.1} parent=1 // pred_fallthru
      _
    // Predicated region
    $region34: #{actor_mlp_forward.1} parent=1 // pred_check
      _
    $region35: #{actor_mlp_forward.1} parent=1 // pred_check_branch
      %71 = sbr.rel (0) target = $region37
    $region36: #{actor_mlp_forward.1} parent=1 // pred_region
      %72 = dma.done [#allocation8], 512
    $region37: #{actor_mlp_forward.1} parent=1 // pred_fallthru
      _
    %v74 = vld [vmem:[%s0] sm:$0xff]
    %v75 = vpack.c.bf16 %v74, %v74
    %v76 = vld [vmem:[#allocation7] sm:$0xff]
    %v77 = vld [vmem:[#allocation7 + $0x8] sm:$0xff]
    %v78 = vld [vmem:[#allocation7 + $0x10] sm:$0xff]
    %v79 = vld [vmem:[#allocation7 + $0x18] sm:$0xff]
    %v80 = vld [vmem:[#allocation2] sm:$0xff]
    %v81 = vld [vmem:[#allocation2 + $0x8] sm:$0xff]
    %v82 = vld [vmem:[#allocation2 + $0x10] sm:$0xff]
    %v83 = vld [vmem:[#allocation2 + $0x18] sm:$0xff]
    %v84 = vlaneseq
    %v85 = vshrl.u32 %v84, 7
    %v86 = vsub.s32 0, %v85
    %v87 = vrot.slane %v76, %v86
    %v88 = vlaneseq
    %v89 = vshrl.u32 %v88, 7
    %v90 = vsub.s32 0, %v89
    %v91 = vrot.slane %v77, %v90
    %v92 = vlaneseq
    %v93 = vshrl.u32 %v92, 7
    %v94 = vsub.s32 0, %v93
    %v95 = vrot.slane %v78, %v94
    %v96 = vlaneseq
    %v97 = vshrl.u32 %v96, 7
    %v98 = vsub.s32 0, %v97
    %v99 = vrot.slane %v79, %v98
    %v104 = vunpack.c.l.b16 %v80
    %v105 = vunpack.c.h.b16 %v80
    %v106 = vunpack.c.l.b16 %v81
    %v107 = vunpack.c.h.b16 %v81
    %v108 = vunpack.c.l.b16 %v82
    %v109 = vunpack.c.h.b16 %v82
    %v110 = vunpack.c.l.b16 %v83
    %v111 = vunpack.c.h.b16 %v83
    %v112 = vpack.c.b16 %v108, %v104
    %v113 = vpack.c.b16 %v109, %v105
    %v114 = vpack.c.b16 %v110, %v106
    %v115 = vpack.c.b16 %v111, %v107
    %vm120 = vcmask 130048
    %v122 = vsel %vm120, %v75, 0
    %124 = vmatprep.subr.bf16.mxu0 %v113
    %125 = vmatpush1.bf16.msra.mxu0 %v112
    %126 = vmatprep.subr.bf16.mxu0 0
    %127 = vmatpush1.bf16.msra.mxu0 0
    %128 = vmatprep.subr.bf16.mxu0 0
    %129 = vmatpush1.bf16.msra.mxu0 0
    %130 = vmatprep.subr.bf16.mxu0 0
    %131 = vmatpush1.bf16.msra.mxu0 0
    %132 = vmatprep.subr.bf16.mxu0 0
    %133 = vmatpush1.bf16.msra.mxu0 0
    %134 = vmatprep.subr.bf16.mxu0 0
    %135 = vmatpush1.bf16.msra.mxu0 0
    %136 = vmatprep.subr.bf16.mxu0 0
    %137 = vmatpush1.bf16.msra.mxu0 0
    %138 = vmatprep.subr.bf16.mxu0 0
    %139 = vmatpush1.bf16.msra.mxu0 0
    %140 = vmatprep.subr.bf16.mxu0 0
    %141 = vmatpush1.bf16.msra.mxu0 0
    %142 = vmatprep.subr.bf16.mxu0 0
    %143 = vmatpush1.bf16.msra.mxu0 0
    %144 = vmatprep.subr.bf16.mxu0 0
    %145 = vmatpush1.bf16.msra.mxu0 0
    %146 = vmatprep.subr.bf16.mxu0 0
    %147 = vmatpush1.bf16.msra.mxu0 0
    %148 = vmatprep.subr.bf16.mxu0 0
    %149 = vmatpush1.bf16.msra.mxu0 0
    %150 = vmatprep.subr.bf16.mxu0 0
    %151 = vmatpush1.bf16.msra.mxu0 0
    %152 = vmatprep.subr.bf16.mxu0 0
    %153 = vmatpush1.bf16.msra.mxu0 0
    %154 = vmatprep.subr.bf16.mxu0 0
    %155 = vmatpush1.bf16.msra.mxu0 0
    %156 = vmatprep.mubr.bf16.mxu0 0
    %157 = vmatmul.mubr.bf16.gmra.mrb[0].mxu0 %v122
    %v158 = vpop.f32.mrb[0].mxu0
    %v159 = vadd.f32 %v87, %v158
    %v160 = vpop.f32.mrb[0].mxu0
    %v161 = vadd.f32 %v91, %v160
    %v162 = vpop.f32.mrb[0].mxu0
    %v163 = vpop.f32.mrb[0].mxu0
    %164 = vdwg.mxu0
    %165 = vmatprep.subr.bf16.mxu0 %v115
    %166 = vmatpush1.bf16.msra.mxu0 %v114
    %167 = vmatprep.subr.bf16.mxu0 0
    %168 = vmatpush1.bf16.msra.mxu0 0
    %169 = vmatprep.subr.bf16.mxu0 0
    %170 = vmatpush1.bf16.msra.mxu0 0
    %171 = vmatprep.subr.bf16.mxu0 0
    %172 = vmatpush1.bf16.msra.mxu0 0
    %173 = vmatprep.subr.bf16.mxu0 0
    %174 = vmatpush1.bf16.msra.mxu0 0
    %175 = vmatprep.subr.bf16.mxu0 0
    %176 = vmatpush1.bf16.msra.mxu0 0
    %177 = vmatprep.subr.bf16.mxu0 0
    %178 = vmatpush1.bf16.msra.mxu0 0
    %179 = vmatprep.subr.bf16.mxu0 0
    %180 = vmatpush1.bf16.msra.mxu0 0
    %181 = vmatprep.subr.bf16.mxu0 0
    %182 = vmatpush1.bf16.msra.mxu0 0
    %183 = vmatprep.subr.bf16.mxu0 0
    %184 = vmatpush1.bf16.msra.mxu0 0
    %185 = vmatprep.subr.bf16.mxu0 0
    %186 = vmatpush1.bf16.msra.mxu0 0
    %187 = vmatprep.subr.bf16.mxu0 0
    %188 = vmatpush1.bf16.msra.mxu0 0
    %189 = vmatprep.subr.bf16.mxu0 0
    %190 = vmatpush1.bf16.msra.mxu0 0
    %191 = vmatprep.subr.bf16.mxu0 0
    %192 = vmatpush1.bf16.msra.mxu0 0
    %193 = vmatprep.subr.bf16.mxu0 0
    %194 = vmatpush1.bf16.msra.mxu0 0
    %195 = vmatprep.subr.bf16.mxu0 0
    %196 = vmatpush1.bf16.msra.mxu0 0
    %197 = vmatprep.mubr.bf16.mxu0 0
    %198 = vmatmul.mubr.bf16.gmra.mrb[0].mxu0 %v122
    %v199 = vpop.f32.mrb[0].mxu0
    %v200 = vadd.f32 %v95, %v199
    %v201 = vpop.f32.mrb[0].mxu0
    %v202 = vadd.f32 %v99, %v201
    %v203 = vpop.f32.mrb[0].mxu0
    %v204 = vpop.f32.mrb[0].mxu0
    %205 = vdwg.mxu0
    %v206 = vtanh.pop %v159
    %v207 = vtanh.pop %v161
    %v208 = vtanh.pop %v200
    %v209 = vtanh.pop %v202
    %v210 = vpack.c.bf16 %v206, %v206
    %v211 = vpack.c.bf16 %v207, %v207
    %v212 = vpack.c.bf16 %v208, %v208
    %v213 = vpack.c.bf16 %v209, %v209
    %v214 = vld [vmem:[#allocation4] sm:$0xff]
    %v215 = vld [vmem:[#allocation4 + $0x8] sm:$0xf]
    %v216 = vld [vmem:[#allocation4 + $0xc] sm:$0xff]
    %v217 = vld [vmem:[#allocation4 + $0x14] sm:$0xf]
    %v218 = vld [vmem:[#allocation4 + $0x18] sm:$0xff]
    %v219 = vld [vmem:[#allocation4 + $0x20] sm:$0xf]
    %v220 = vld [vmem:[#allocation4 + $0x24] sm:$0xff]
    %v221 = vld [vmem:[#allocation4 + $0x2c] sm:$0xf]
    %v222 = vld [vmem:[#allocation4 + $0x30] sm:$0xff]
    %v223 = vld [vmem:[#allocation4 + $0x38] sm:$0xf]
    %v224 = vld [vmem:[#allocation4 + $0x3c] sm:$0xff]
    %v225 = vld [vmem:[#allocation4 + $0x44] sm:$0xf]
    %v226 = vld [vmem:[#allocation4 + $0x48] sm:$0xff]
    %v227 = vld [vmem:[#allocation4 + $0x50] sm:$0xf]
    %v228 = vld [vmem:[#allocation4 + $0x54] sm:$0xff]
    %v229 = vld [vmem:[#allocation4 + $0x5c] sm:$0xf]
    %v230 = vld [vmem:[#allocation4 + $0x60] sm:$0xff]
    %v231 = vld [vmem:[#allocation4 + $0x68] sm:$0xf]
    %v232 = vld [vmem:[#allocation4 + $0x6c] sm:$0xff]
    %v233 = vld [vmem:[#allocation4 + $0x74] sm:$0xf]
    %v234 = vld [vmem:[#allocation4 + $0x78] sm:$0xff]
    %v235 = vld [vmem:[#allocation4 + $0x80] sm:$0xf]
    %v236 = vld [vmem:[#allocation4 + $0x84] sm:$0xff]
    %v237 = vld [vmem:[#allocation4 + $0x8c] sm:$0xf]
    %v238 = vld [vmem:[#allocation4 + $0x90] sm:$0xff]
    %v239 = vld [vmem:[#allocation4 + $0x98] sm:$0xf]
    %v240 = vld [vmem:[#allocation4 + $0x9c] sm:$0xff]
    %v241 = vld [vmem:[#allocation4 + $0xa4] sm:$0xf]
    %v242 = vld [vmem:[#allocation4 + $0xa8] sm:$0xff]
    %v243 = vld [vmem:[#allocation4 + $0xb0] sm:$0xf]
    %v244 = vld [vmem:[#allocation4 + $0xb4] sm:$0xff]
    %v245 = vld [vmem:[#allocation4 + $0xbc] sm:$0xf]
    %v246 = vld [vmem:[#allocation4 + $0xc0] sm:$0xff]
    %v247 = vld [vmem:[#allocation4 + $0xc8] sm:$0xf]
    %v248 = vld [vmem:[#allocation4 + $0xcc] sm:$0xff]
    %v249 = vld [vmem:[#allocation4 + $0xd4] sm:$0xf]
    %v250 = vld [vmem:[#allocation4 + $0xd8] sm:$0xff]
    %v251 = vld [vmem:[#allocation4 + $0xe0] sm:$0xf]
    %v252 = vld [vmem:[#allocation4 + $0xe4] sm:$0xff]
    %v253 = vld [vmem:[#allocation4 + $0xec] sm:$0xf]
    %v254 = vld [vmem:[#allocation4 + $0xf0] sm:$0xff]
    %v255 = vld [vmem:[#allocation4 + $0xf8] sm:$0xf]
    %v256 = vld [vmem:[#allocation4 + $0xfc] sm:$0xff]
    %v257 = vld [vmem:[#allocation4 + $0x104] sm:$0xf]
    %v258 = vld [vmem:[#allocation4 + $0x108] sm:$0xff]
    %v259 = vld [vmem:[#allocation4 + $0x110] sm:$0xf]
    %v260 = vld [vmem:[#allocation4 + $0x114] sm:$0xff]
    %v261 = vld [vmem:[#allocation4 + $0x11c] sm:$0xf]
    %v262 = vld [vmem:[#allocation4 + $0x120] sm:$0xff]
    %v263 = vld [vmem:[#allocation4 + $0x128] sm:$0xf]
    %v264 = vld [vmem:[#allocation4 + $0x12c] sm:$0xff]
    %v265 = vld [vmem:[#allocation4 + $0x134] sm:$0xf]
    %v266 = vld [vmem:[#allocation4 + $0x138] sm:$0xff]
    %v267 = vld [vmem:[#allocation4 + $0x140] sm:$0xf]
    %v268 = vld [vmem:[#allocation4 + $0x144] sm:$0xff]
    %v269 = vld [vmem:[#allocation4 + $0x14c] sm:$0xf]
    %v270 = vld [vmem:[#allocation4 + $0x150] sm:$0xff]
    %v271 = vld [vmem:[#allocation4 + $0x158] sm:$0xf]
    %v272 = vld [vmem:[#allocation4 + $0x15c] sm:$0xff]
    %v273 = vld [vmem:[#allocation4 + $0x164] sm:$0xf]
    %v274 = vld [vmem:[#allocation4 + $0x168] sm:$0xff]
    %v275 = vld [vmem:[#allocation4 + $0x170] sm:$0xf]
    %v276 = vld [vmem:[#allocation4 + $0x174] sm:$0xff]
    %v277 = vld [vmem:[#allocation4 + $0x17c] sm:$0xf]
    %v278 = vld [vmem:[#allocation4 + $0x180] sm:$0xff]
    %v279 = vld [vmem:[#allocation4 + $0x188] sm:$0xf]
    %v280 = vld [vmem:[#allocation4 + $0x18c] sm:$0xff]
    %v281 = vld [vmem:[#allocation4 + $0x194] sm:$0xf]
    %v282 = vld [vmem:[#allocation4 + $0x198] sm:$0xff]
    %v283 = vld [vmem:[#allocation4 + $0x1a0] sm:$0xf]
    %v284 = vld [vmem:[#allocation4 + $0x1a4] sm:$0xff]
    %v285 = vld [vmem:[#allocation4 + $0x1ac] sm:$0xf]
    %v286 = vld [vmem:[#allocation4 + $0x1b0] sm:$0xff]
    %v287 = vld [vmem:[#allocation4 + $0x1b8] sm:$0xf]
    %v288 = vld [vmem:[#allocation4 + $0x1bc] sm:$0xff]
    %v289 = vld [vmem:[#allocation4 + $0x1c4] sm:$0xf]
    %v290 = vld [vmem:[#allocation4 + $0x1c8] sm:$0xff]
    %v291 = vld [vmem:[#allocation4 + $0x1d0] sm:$0xf]
    %v292 = vld [vmem:[#allocation4 + $0x1d4] sm:$0xff]
    %v293 = vld [vmem:[#allocation4 + $0x1dc] sm:$0xf]
    %v294 = vld [vmem:[#allocation4 + $0x1e0] sm:$0xff]
    %v295 = vld [vmem:[#allocation4 + $0x1e8] sm:$0xf]
    %v296 = vld [vmem:[#allocation4 + $0x1ec] sm:$0xff]
    %v297 = vld [vmem:[#allocation4 + $0x1f4] sm:$0xf]
    %v298 = vld [vmem:[#allocation4 + $0x1f8] sm:$0xff]
    %v299 = vld [vmem:[#allocation4 + $0x200] sm:$0xf]
    %v300 = vld [vmem:[#allocation4 + $0x204] sm:$0xff]
    %v301 = vld [vmem:[#allocation4 + $0x20c] sm:$0xf]
    %v302 = vld [vmem:[#allocation4 + $0x210] sm:$0xff]
    %v303 = vld [vmem:[#allocation4 + $0x218] sm:$0xf]
    %v304 = vld [vmem:[#allocation4 + $0x21c] sm:$0xff]
    %v305 = vld [vmem:[#allocation4 + $0x224] sm:$0xf]
    %v306 = vld [vmem:[#allocation4 + $0x228] sm:$0xff]
    %v307 = vld [vmem:[#allocation4 + $0x230] sm:$0xf]
    %v308 = vld [vmem:[#allocation4 + $0x234] sm:$0xff]
    %v309 = vld [vmem:[#allocation4 + $0x23c] sm:$0xf]
    %v310 = vld [vmem:[#allocation4 + $0x240] sm:$0xff]
    %v311 = vld [vmem:[#allocation4 + $0x248] sm:$0xf]
    %v312 = vld [vmem:[#allocation4 + $0x24c] sm:$0xff]
    %v313 = vld [vmem:[#allocation4 + $0x254] sm:$0xf]
    %v314 = vld [vmem:[#allocation4 + $0x258] sm:$0xff]
    %v315 = vld [vmem:[#allocation4 + $0x260] sm:$0xf]
    %v316 = vld [vmem:[#allocation4 + $0x264] sm:$0xff]
    %v317 = vld [vmem:[#allocation4 + $0x26c] sm:$0xf]
    %v318 = vld [vmem:[#allocation4 + $0x270] sm:$0xff]
    %v319 = vld [vmem:[#allocation4 + $0x278] sm:$0xf]
    %v320 = vld [vmem:[#allocation4 + $0x27c] sm:$0xff]
    %v321 = vld [vmem:[#allocation4 + $0x284] sm:$0xf]
    %v322 = vld [vmem:[#allocation4 + $0x288] sm:$0xff]
    %v323 = vld [vmem:[#allocation4 + $0x290] sm:$0xf]
    %v324 = vld [vmem:[#allocation4 + $0x294] sm:$0xff]
    %v325 = vld [vmem:[#allocation4 + $0x29c] sm:$0xf]
    %v326 = vld [vmem:[#allocation4 + $0x2a0] sm:$0xff]
    %v327 = vld [vmem:[#allocation4 + $0x2a8] sm:$0xf]
    %v328 = vld [vmem:[#allocation4 + $0x2ac] sm:$0xff]
    %v329 = vld [vmem:[#allocation4 + $0x2b4] sm:$0xf]
    %v330 = vld [vmem:[#allocation4 + $0x2b8] sm:$0xff]
    %v331 = vld [vmem:[#allocation4 + $0x2c0] sm:$0xf]
    %v332 = vld [vmem:[#allocation4 + $0x2c4] sm:$0xff]
    %v333 = vld [vmem:[#allocation4 + $0x2cc] sm:$0xf]
    %v334 = vld [vmem:[#allocation4 + $0x2d0] sm:$0xff]
    %v335 = vld [vmem:[#allocation4 + $0x2d8] sm:$0xf]
    %v336 = vld [vmem:[#allocation4 + $0x2dc] sm:$0xff]
    %v337 = vld [vmem:[#allocation4 + $0x2e4] sm:$0xf]
    %v338 = vld [vmem:[#allocation4 + $0x2e8] sm:$0xff]
    %v339 = vld [vmem:[#allocation4 + $0x2f0] sm:$0xf]
    %v340 = vld [vmem:[#allocation4 + $0x2f4] sm:$0xff]
    %v341 = vld [vmem:[#allocation4 + $0x2fc] sm:$0xf]
    %v342 = vlaneseq
    %v343 = vshrl.u32 %v342, 7
    %v344 = vsub.s32 1, %v343
    %v345 = vrot.slane %v76, %v344
    %v346 = vlaneseq
    %v347 = vshrl.u32 %v346, 7
    %v348 = vsub.s32 1, %v347
    %v349 = vrot.slane %v77, %v348
    %v350 = vlaneseq
    %v351 = vshrl.u32 %v350, 7
    %v352 = vsub.s32 1, %v351
    %v353 = vrot.slane %v78, %v352
    %v482 = vunpack.c.l.b16 %v214
    %v483 = vunpack.c.h.b16 %v214
    %v484 = vunpack.c.l.b16 %v215
    %v485 = vunpack.c.l.b16 %v216
    %v486 = vunpack.c.h.b16 %v216
    %v487 = vunpack.c.l.b16 %v217
    %v488 = vunpack.c.l.b16 %v218
    %v489 = vunpack.c.h.b16 %v218
    %v490 = vunpack.c.l.b16 %v219
    %v491 = vunpack.c.l.b16 %v220
    %v492 = vunpack.c.h.b16 %v220
    %v493 = vunpack.c.l.b16 %v221
    %v494 = vunpack.c.l.b16 %v222
    %v495 = vunpack.c.h.b16 %v222
    %v496 = vunpack.c.l.b16 %v223
    %v497 = vunpack.c.l.b16 %v224
    %v498 = vunpack.c.h.b16 %v224
    %v499 = vunpack.c.l.b16 %v225
    %v500 = vunpack.c.l.b16 %v226
    %v501 = vunpack.c.h.b16 %v226
    %v502 = vunpack.c.l.b16 %v227
    %v503 = vunpack.c.l.b16 %v228
    %v504 = vunpack.c.h.b16 %v228
    %v505 = vunpack.c.l.b16 %v229
    %v506 = vunpack.c.l.b16 %v230
    %v507 = vunpack.c.h.b16 %v230
    %v508 = vunpack.c.l.b16 %v231
    %v509 = vunpack.c.l.b16 %v232
    %v510 = vunpack.c.h.b16 %v232
    %v511 = vunpack.c.l.b16 %v233
    %v512 = vunpack.c.l.b16 %v234
    %v513 = vunpack.c.h.b16 %v234
    %v514 = vunpack.c.l.b16 %v235
    %v515 = vunpack.c.l.b16 %v236
    %v516 = vunpack.c.h.b16 %v236
    %v517 = vunpack.c.l.b16 %v237
    %v518 = vunpack.c.l.b16 %v238
    %v519 = vunpack.c.h.b16 %v238
    %v520 = vunpack.c.l.b16 %v239
    %v521 = vunpack.c.l.b16 %v240
    %v522 = vunpack.c.h.b16 %v240
    %v523 = vunpack.c.l.b16 %v241
    %v524 = vunpack.c.l.b16 %v242
    %v525 = vunpack.c.h.b16 %v242
    %v526 = vunpack.c.l.b16 %v243
    %v527 = vunpack.c.l.b16 %v244
    %v528 = vunpack.c.h.b16 %v244
    %v529 = vunpack.c.l.b16 %v245
    %v530 = vunpack.c.l.b16 %v246
    %v531 = vunpack.c.h.b16 %v246
    %v532 = vunpack.c.l.b16 %v247
    %v533 = vunpack.c.l.b16 %v248
    %v534 = vunpack.c.h.b16 %v248
    %v535 = vunpack.c.l.b16 %v249
    %v536 = vunpack.c.l.b16 %v250
    %v537 = vunpack.c.h.b16 %v250
    %v538 = vunpack.c.l.b16 %v251
    %v539 = vunpack.c.l.b16 %v252
    %v540 = vunpack.c.h.b16 %v252
    %v541 = vunpack.c.l.b16 %v253
    %v542 = vunpack.c.l.b16 %v254
    %v543 = vunpack.c.h.b16 %v254
    %v544 = vunpack.c.l.b16 %v255
    %v545 = vunpack.c.l.b16 %v256
    %v546 = vunpack.c.h.b16 %v256
    %v547 = vunpack.c.l.b16 %v257
    %v548 = vunpack.c.l.b16 %v258
    %v549 = vunpack.c.h.b16 %v258
    %v550 = vunpack.c.l.b16 %v259
    %v551 = vunpack.c.l.b16 %v260
    %v552 = vunpack.c.h.b16 %v260
    %v553 = vunpack.c.l.b16 %v261
    %v554 = vunpack.c.l.b16 %v262
    %v555 = vunpack.c.h.b16 %v262
    %v556 = vunpack.c.l.b16 %v263
    %v557 = vunpack.c.l.b16 %v264
    %v558 = vunpack.c.h.b16 %v264
    %v559 = vunpack.c.l.b16 %v265
    %v560 = vunpack.c.l.b16 %v266
    %v561 = vunpack.c.h.b16 %v266
    %v562 = vunpack.c.l.b16 %v267
    %v563 = vunpack.c.l.b16 %v268
    %v564 = vunpack.c.h.b16 %v268
    %v565 = vunpack.c.l.b16 %v269
    %v566 = vunpack.c.l.b16 %v270
    %v567 = vunpack.c.h.b16 %v270
    %v568 = vunpack.c.l.b16 %v271
    %v569 = vunpack.c.l.b16 %v272
    %v570 = vunpack.c.h.b16 %v272
    %v571 = vunpack.c.l.b16 %v273
    %v572 = vunpack.c.l.b16 %v274
    %v573 = vunpack.c.h.b16 %v274
    %v574 = vunpack.c.l.b16 %v275
    %v575 = vunpack.c.l.b16 %v276
    %v576 = vunpack.c.h.b16 %v276
    %v577 = vunpack.c.l.b16 %v277
    %v578 = vunpack.c.l.b16 %v278
    %v579 = vunpack.c.h.b16 %v278
    %v580 = vunpack.c.l.b16 %v279
    %v581 = vunpack.c.l.b16 %v280
    %v582 = vunpack.c.h.b16 %v280
    %v583 = vunpack.c.l.b16 %v281
    %v584 = vunpack.c.l.b16 %v282
    %v585 = vunpack.c.h.b16 %v282
    %v586 = vunpack.c.l.b16 %v283
    %v587 = vunpack.c.l.b16 %v284
    %v588 = vunpack.c.h.b16 %v284
    %v589 = vunpack.c.l.b16 %v285
    %v590 = vunpack.c.l.b16 %v286
    %v591 = vunpack.c.h.b16 %v286
    %v592 = vunpack.c.l.b16 %v287
    %v593 = vunpack.c.l.b16 %v288
    %v594 = vunpack.c.h.b16 %v288
    %v595 = vunpack.c.l.b16 %v289
    %v596 = vunpack.c.l.b16 %v290
    %v597 = vunpack.c.h.b16 %v290
    %v598 = vunpack.c.l.b16 %v291
    %v599 = vunpack.c.l.b16 %v292
    %v600 = vunpack.c.h.b16 %v292
    %v601 = vunpack.c.l.b16 %v293
    %v602 = vunpack.c.l.b16 %v294
    %v603 = vunpack.c.h.b16 %v294
    %v604 = vunpack.c.l.b16 %v295
    %v605 = vunpack.c.l.b16 %v296
    %v606 = vunpack.c.h.b16 %v296
    %v607 = vunpack.c.l.b16 %v297
    %v608 = vunpack.c.l.b16 %v298
    %v609 = vunpack.c.h.b16 %v298
    %v610 = vunpack.c.l.b16 %v299
    %v611 = vunpack.c.l.b16 %v300
    %v612 = vunpack.c.h.b16 %v300
    %v613 = vunpack.c.l.b16 %v301
    %v614 = vunpack.c.l.b16 %v302
    %v615 = vunpack.c.h.b16 %v302
    %v616 = vunpack.c.l.b16 %v303
    %v617 = vunpack.c.l.b16 %v304
    %v618 = vunpack.c.h.b16 %v304
    %v619 = vunpack.c.l.b16 %v305
    %v620 = vunpack.c.l.b16 %v306
    %v621 = vunpack.c.h.b16 %v306
    %v622 = vunpack.c.l.b16 %v307
    %v623 = vunpack.c.l.b16 %v308
    %v624 = vunpack.c.h.b16 %v308
    %v625 = vunpack.c.l.b16 %v309
    %v626 = vunpack.c.l.b16 %v310
    %v627 = vunpack.c.h.b16 %v310
    %v628 = vunpack.c.l.b16 %v311
    %v629 = vunpack.c.l.b16 %v312
    %v630 = vunpack.c.h.b16 %v312
    %v631 = vunpack.c.l.b16 %v313
    %v632 = vunpack.c.l.b16 %v314
    %v633 = vunpack.c.h.b16 %v314
    %v634 = vunpack.c.l.b16 %v315
    %v635 = vunpack.c.l.b16 %v316
    %v636 = vunpack.c.h.b16 %v316
    %v637 = vunpack.c.l.b16 %v317
    %v638 = vunpack.c.l.b16 %v318
    %v639 = vunpack.c.h.b16 %v318
    %v640 = vunpack.c.l.b16 %v319
    %v641 = vunpack.c.l.b16 %v320
    %v642 = vunpack.c.h.b16 %v320
    %v643 = vunpack.c.l.b16 %v321
    %v644 = vunpack.c.l.b16 %v322
    %v645 = vunpack.c.h.b16 %v322
    %v646 = vunpack.c.l.b16 %v323
    %v647 = vunpack.c.l.b16 %v324
    %v648 = vunpack.c.h.b16 %v324
    %v649 = vunpack.c.l.b16 %v325
    %v650 = vunpack.c.l.b16 %v326
    %v651 = vunpack.c.h.b16 %v326
    %v652 = vunpack.c.l.b16 %v327
    %v653 = vunpack.c.l.b16 %v328
    %v654 = vunpack.c.h.b16 %v328
    %v655 = vunpack.c.l.b16 %v329
    %v656 = vunpack.c.l.b16 %v330
    %v657 = vunpack.c.h.b16 %v330
    %v658 = vunpack.c.l.b16 %v331
    %v659 = vunpack.c.l.b16 %v332
    %v660 = vunpack.c.h.b16 %v332
    %v661 = vunpack.c.l.b16 %v333
    %v662 = vunpack.c.l.b16 %v334
    %v663 = vunpack.c.h.b16 %v334
    %v664 = vunpack.c.l.b16 %v335
    %v665 = vunpack.c.l.b16 %v336
    %v666 = vunpack.c.h.b16 %v336
    %v667 = vunpack.c.l.b16 %v337
    %v668 = vunpack.c.l.b16 %v338
    %v669 = vunpack.c.h.b16 %v338
    %v670 = vunpack.c.l.b16 %v339
    %v671 = vunpack.c.l.b16 %v340
    %v672 = vunpack.c.h.b16 %v340
    %v673 = vunpack.c.l.b16 %v341
    %v674 = vpack.c.b16 %v485, %v482
    %v675 = vpack.c.b16 %v486, %v483
    %v676 = vpack.c.b16 %v487, %v484
    %v677 = vpack.c.b16 %v491, %v488
    %v678 = vpack.c.b16 %v492, %v489
    %v679 = vpack.c.b16 %v493, %v490
    %v680 = vpack.c.b16 %v497, %v494
    %v681 = vpack.c.b16 %v498, %v495
    %v682 = vpack.c.b16 %v499, %v496
    %v683 = vpack.c.b16 %v503, %v500
    %v684 = vpack.c.b16 %v504, %v501
    %v685 = vpack.c.b16 %v505, %v502
    %v686 = vpack.c.b16 %v509, %v506
    %v687 = vpack.c.b16 %v510, %v507
    %v688 = vpack.c.b16 %v511, %v508
    %v689 = vpack.c.b16 %v515, %v512
    %v690 = vpack.c.b16 %v516, %v513
    %v691 = vpack.c.b16 %v517, %v514
    %v692 = vpack.c.b16 %v521, %v518
    %v693 = vpack.c.b16 %v522, %v519
    %v694 = vpack.c.b16 %v523, %v520
    %v695 = vpack.c.b16 %v527, %v524
    %v696 = vpack.c.b16 %v528, %v525
    %v697 = vpack.c.b16 %v529, %v526
    %v698 = vpack.c.b16 %v533, %v530
    %v699 = vpack.c.b16 %v534, %v531
    %v700 = vpack.c.b16 %v535, %v532
    %v701 = vpack.c.b16 %v539, %v536
    %v702 = vpack.c.b16 %v540, %v537
    %v703 = vpack.c.b16 %v541, %v538
    %v704 = vpack.c.b16 %v545, %v542
    %v705 = vpack.c.b16 %v546, %v543
    %v706 = vpack.c.b16 %v547, %v544
    %v707 = vpack.c.b16 %v551, %v548
    %v708 = vpack.c.b16 %v552, %v549
    %v709 = vpack.c.b16 %v553, %v550
    %v710 = vpack.c.b16 %v557, %v554
    %v711 = vpack.c.b16 %v558, %v555
    %v712 = vpack.c.b16 %v559, %v556
    %v713 = vpack.c.b16 %v563, %v560
    %v714 = vpack.c.b16 %v564, %v561
    %v715 = vpack.c.b16 %v565, %v562
    %v716 = vpack.c.b16 %v569, %v566
    %v717 = vpack.c.b16 %v570, %v567
    %v718 = vpack.c.b16 %v571, %v568
    %v719 = vpack.c.b16 %v575, %v572
    %v720 = vpack.c.b16 %v576, %v573
    %v721 = vpack.c.b16 %v577, %v574
    %v722 = vpack.c.b16 %v581, %v578
    %v723 = vpack.c.b16 %v582, %v579
    %v724 = vpack.c.b16 %v583, %v580
    %v725 = vpack.c.b16 %v587, %v584
    %v726 = vpack.c.b16 %v588, %v585
    %v727 = vpack.c.b16 %v589, %v586
    %v728 = vpack.c.b16 %v593, %v590
    %v729 = vpack.c.b16 %v594, %v591
    %v730 = vpack.c.b16 %v595, %v592
    %v731 = vpack.c.b16 %v599, %v596
    %v732 = vpack.c.b16 %v600, %v597
    %v733 = vpack.c.b16 %v601, %v598
    %v734 = vpack.c.b16 %v605, %v602
    %v735 = vpack.c.b16 %v606, %v603
    %v736 = vpack.c.b16 %v607, %v604
    %v737 = vpack.c.b16 %v611, %v608
    %v738 = vpack.c.b16 %v612, %v609
    %v739 = vpack.c.b16 %v613, %v610
    %v740 = vpack.c.b16 %v617, %v614
    %v741 = vpack.c.b16 %v618, %v615
    %v742 = vpack.c.b16 %v619, %v616
    %v743 = vpack.c.b16 %v623, %v620
    %v744 = vpack.c.b16 %v624, %v621
    %v745 = vpack.c.b16 %v625, %v622
    %v746 = vpack.c.b16 %v629, %v626
    %v747 = vpack.c.b16 %v630, %v627
    %v748 = vpack.c.b16 %v631, %v628
    %v749 = vpack.c.b16 %v635, %v632
    %v750 = vpack.c.b16 %v636, %v633
    %v751 = vpack.c.b16 %v637, %v634
    %v752 = vpack.c.b16 %v641, %v638
    %v753 = vpack.c.b16 %v642, %v639
    %v754 = vpack.c.b16 %v643, %v640
    %v755 = vpack.c.b16 %v647, %v644
    %v756 = vpack.c.b16 %v648, %v645
    %v757 = vpack.c.b16 %v649, %v646
    %v758 = vpack.c.b16 %v653, %v650
    %v759 = vpack.c.b16 %v654, %v651
    %v760 = vpack.c.b16 %v655, %v652
    %v761 = vpack.c.b16 %v659, %v656
    %v762 = vpack.c.b16 %v660, %v657
    %v763 = vpack.c.b16 %v661, %v658
    %v764 = vpack.c.b16 %v665, %v662
    %v765 = vpack.c.b16 %v666, %v663
    %v766 = vpack.c.b16 %v667, %v664
    %v767 = vpack.c.b16 %v671, %v668
    %v768 = vpack.c.b16 %v672, %v669
    %v769 = vpack.c.b16 %v673, %v670
    %866 = vmatprep.subr.bf16.mxu0 %v675
    %867 = vmatpush1.bf16.msra.mxu0 %v674
    %868 = vmatprep.subr.bf16.mxu0 %v678
    %869 = vmatpush1.bf16.msra.mxu0 %v677
    %870 = vmatprep.subr.bf16.mxu0 %v681
    %871 = vmatpush1.bf16.msra.mxu0 %v680
    %872 = vmatprep.subr.bf16.mxu0 %v684
    %873 = vmatpush1.bf16.msra.mxu0 %v683
    %874 = vmatprep.subr.bf16.mxu0 %v687
    %875 = vmatpush1.bf16.msra.mxu0 %v686
    %876 = vmatprep.subr.bf16.mxu0 %v690
    %877 = vmatpush1.bf16.msra.mxu0 %v689
    %878 = vmatprep.subr.bf16.mxu0 %v693
    %879 = vmatpush1.bf16.msra.mxu0 %v692
    %880 = vmatprep.subr.bf16.mxu0 %v696
    %881 = vmatpush1.bf16.msra.mxu0 %v695
    %882 = vmatprep.subr.bf16.mxu0 %v699
    %883 = vmatpush1.bf16.msra.mxu0 %v698
    %884 = vmatprep.subr.bf16.mxu0 %v702
    %885 = vmatpush1.bf16.msra.mxu0 %v701
    %886 = vmatprep.subr.bf16.mxu0 %v705
    %887 = vmatpush1.bf16.msra.mxu0 %v704
    %888 = vmatprep.subr.bf16.mxu0 %v708
    %889 = vmatpush1.bf16.msra.mxu0 %v707
    %890 = vmatprep.subr.bf16.mxu0 %v711
    %891 = vmatpush1.bf16.msra.mxu0 %v710
    %892 = vmatprep.subr.bf16.mxu0 %v714
    %893 = vmatpush1.bf16.msra.mxu0 %v713
    %894 = vmatprep.subr.bf16.mxu0 %v717
    %895 = vmatpush1.bf16.msra.mxu0 %v716
    %896 = vmatprep.subr.bf16.mxu0 %v720
    %897 = vmatpush1.bf16.msra.mxu0 %v719
    %898 = vmatprep.mubr.bf16.mxu0 %v211
    %899 = vmatmul.mubr.bf16.gmra.mrb[0].mxu0 %v210
    %v900 = vpop.f32.mrb[0].mxu0
    %v901 = vadd.f32 %v345, %v900
    %v902 = vpop.f32.mrb[0].mxu0
    %v903 = vadd.f32 %v349, %v902
    %v904 = vpop.f32.mrb[0].mxu0
    %v905 = vpop.f32.mrb[0].mxu0
    %906 = vdwg.mxu0
    %907 = vmatprep.subr.bf16.mxu0 %v723
    %908 = vmatpush1.bf16.msra.mxu0 %v722
    %909 = vmatprep.subr.bf16.mxu0 %v726
    %910 = vmatpush1.bf16.msra.mxu0 %v725
    %911 = vmatprep.subr.bf16.mxu0 %v729
    %912 = vmatpush1.bf16.msra.mxu0 %v728
    %913 = vmatprep.subr.bf16.mxu0 %v732
    %914 = vmatpush1.bf16.msra.mxu0 %v731
    %915 = vmatprep.subr.bf16.mxu0 %v735
    %916 = vmatpush1.bf16.msra.mxu0 %v734
    %917 = vmatprep.subr.bf16.mxu0 %v738
    %918 = vmatpush1.bf16.msra.mxu0 %v737
    %919 = vmatprep.subr.bf16.mxu0 %v741
    %920 = vmatpush1.bf16.msra.mxu0 %v740
    %921 = vmatprep.subr.bf16.mxu0 %v744
    %922 = vmatpush1.bf16.msra.mxu0 %v743
    %923 = vmatprep.subr.bf16.mxu0 %v747
    %924 = vmatpush1.bf16.msra.mxu0 %v746
    %925 = vmatprep.subr.bf16.mxu0 %v750
    %926 = vmatpush1.bf16.msra.mxu0 %v749
    %927 = vmatprep.subr.bf16.mxu0 %v753
    %928 = vmatpush1.bf16.msra.mxu0 %v752
    %929 = vmatprep.subr.bf16.mxu0 %v756
    %930 = vmatpush1.bf16.msra.mxu0 %v755
    %931 = vmatprep.subr.bf16.mxu0 %v759
    %932 = vmatpush1.bf16.msra.mxu0 %v758
    %933 = vmatprep.subr.bf16.mxu0 %v762
    %934 = vmatpush1.bf16.msra.mxu0 %v761
    %935 = vmatprep.subr.bf16.mxu0 %v765
    %936 = vmatpush1.bf16.msra.mxu0 %v764
    %937 = vmatprep.subr.bf16.mxu0 %v768
    %938 = vmatpush1.bf16.msra.mxu0 %v767
    %939 = vmatprep.mubr.bf16.mxu0 %v213
    %940 = vmatmul.mubr.bf16.gmra.mrb[0].mxu0 %v212
    %v941 = vpop.f32.mrb[0].mxu0
    %v942 = vadd.f32 %v901, %v941
    %v943 = vpop.f32.mrb[0].mxu0
    %v944 = vadd.f32 %v903, %v943
    %v945 = vpop.f32.mrb[0].mxu0
    %v946 = vpop.f32.mrb[0].mxu0
    %947 = vdwg.mxu0
    %948 = vmatprep.subr.bf16.mxu0 0
    %949 = vmatpush1.bf16.msra.mxu0 %v676
    %950 = vmatprep.subr.bf16.mxu0 0
    %951 = vmatpush1.bf16.msra.mxu0 %v679
    %952 = vmatprep.subr.bf16.mxu0 0
    %953 = vmatpush1.bf16.msra.mxu0 %v682
    %954 = vmatprep.subr.bf16.mxu0 0
    %955 = vmatpush1.bf16.msra.mxu0 %v685
    %956 = vmatprep.subr.bf16.mxu0 0
    %957 = vmatpush1.bf16.msra.mxu0 %v688
    %958 = vmatprep.subr.bf16.mxu0 0
    %959 = vmatpush1.bf16.msra.mxu0 %v691
    %960 = vmatprep.subr.bf16.mxu0 0
    %961 = vmatpush1.bf16.msra.mxu0 %v694
    %962 = vmatprep.subr.bf16.mxu0 0
    %963 = vmatpush1.bf16.msra.mxu0 %v697
    %964 = vmatprep.subr.bf16.mxu0 0
    %965 = vmatpush1.bf16.msra.mxu0 %v700
    %966 = vmatprep.subr.bf16.mxu0 0
    %967 = vmatpush1.bf16.msra.mxu0 %v703
    %968 = vmatprep.subr.bf16.mxu0 0
    %969 = vmatpush1.bf16.msra.mxu0 %v706
    %970 = vmatprep.subr.bf16.mxu0 0
    %971 = vmatpush1.bf16.msra.mxu0 %v709
    %972 = vmatprep.subr.bf16.mxu0 0
    %973 = vmatpush1.bf16.msra.mxu0 %v712
    %974 = vmatprep.subr.bf16.mxu0 0
    %975 = vmatpush1.bf16.msra.mxu0 %v715
    %976 = vmatprep.subr.bf16.mxu0 0
    %977 = vmatpush1.bf16.msra.mxu0 %v718
    %978 = vmatprep.subr.bf16.mxu0 0
    %979 = vmatpush1.bf16.msra.mxu0 %v721
    %980 = vmatprep.mubr.bf16.mxu0 %v211
    %981 = vmatmul.mubr.bf16.gmra.mrb[0].mxu0 %v210
    %v982 = vpop.f32.mrb[0].mxu0
    %v983 = vadd.f32 %v353, %v982
    %v984 = vpop.f32.mrb[0].mxu0
    %v985 = vpop.f32.mrb[0].mxu0
    %v986 = vpop.f32.mrb[0].mxu0
    %987 = vdwg.mxu0
    %988 = vmatprep.subr.bf16.mxu0 0
    %989 = vmatpush1.bf16.msra.mxu0 %v724
    %990 = vmatprep.subr.bf16.mxu0 0
    %991 = vmatpush1.bf16.msra.mxu0 %v727
    %992 = vmatprep.subr.bf16.mxu0 0
    %993 = vmatpush1.bf16.msra.mxu0 %v730
    %994 = vmatprep.subr.bf16.mxu0 0
    %995 = vmatpush1.bf16.msra.mxu0 %v733
    %996 = vmatprep.subr.bf16.mxu0 0
    %997 = vmatpush1.bf16.msra.mxu0 %v736
    %998 = vmatprep.subr.bf16.mxu0 0
    %999 = vmatpush1.bf16.msra.mxu0 %v739
    %1000 = vmatprep.subr.bf16.mxu0 0
    %1001 = vmatpush1.bf16.msra.mxu0 %v742
    %1002 = vmatprep.subr.bf16.mxu0 0
    %1003 = vmatpush1.bf16.msra.mxu0 %v745
    %1004 = vmatprep.subr.bf16.mxu0 0
    %1005 = vmatpush1.bf16.msra.mxu0 %v748
    %1006 = vmatprep.subr.bf16.mxu0 0
    %1007 = vmatpush1.bf16.msra.mxu0 %v751
    %1008 = vmatprep.subr.bf16.mxu0 0
    %1009 = vmatpush1.bf16.msra.mxu0 %v754
    %1010 = vmatprep.subr.bf16.mxu0 0
    %1011 = vmatpush1.bf16.msra.mxu0 %v757
    %1012 = vmatprep.subr.bf16.mxu0 0
    %1013 = vmatpush1.bf16.msra.mxu0 %v760
    %1014 = vmatprep.subr.bf16.mxu0 0
    %1015 = vmatpush1.bf16.msra.mxu0 %v763
    %1016 = vmatprep.subr.bf16.mxu0 0
    %1017 = vmatpush1.bf16.msra.mxu0 %v766
    %1018 = vmatprep.subr.bf16.mxu0 0
    %1019 = vmatpush1.bf16.msra.mxu0 %v769
    %1020 = vmatprep.mubr.bf16.mxu0 %v213
    %1021 = vmatmul.mubr.bf16.gmra.mrb[0].mxu0 %v212
    %v1022 = vpop.f32.mrb[0].mxu0
    %v1023 = vadd.f32 %v983, %v1022
    %v1024 = vpop.f32.mrb[0].mxu0
    %v1025 = vpop.f32.mrb[0].mxu0
    %v1026 = vpop.f32.mrb[0].mxu0
    %1027 = vdwg.mxu0
    %v1028 = vtanh.pop %v942
    %v1029 = vtanh.pop %v944
    %v1030 = vtanh.pop %v1023
    %v1031 = vpack.c.bf16 %v1028, %v1028
    %v1032 = vpack.c.bf16 %v1029, %v1029
    %v1033 = vpack.c.bf16 %v1030, %v1030
    %v1034 = vld [vmem:[#allocation6] sm:$0xf]
    %v1035 = vld [vmem:[#allocation6 + $0x4] sm:$0xf]
    %v1036 = vld [vmem:[#allocation6 + $0x8] sm:$0xf]
    %v1037 = vld [vmem:[#allocation6 + $0xc] sm:$0xf]
    %v1038 = vld [vmem:[#allocation6 + $0x10] sm:$0xf]
    %v1039 = vld [vmem:[#allocation6 + $0x14] sm:$0xf]
    %v1040 = vld [vmem:[#allocation6 + $0x18] sm:$0xf]
    %v1041 = vld [vmem:[#allocation6 + $0x1c] sm:$0xf]
    %v1042 = vld [vmem:[#allocation6 + $0x20] sm:$0xf]
    %v1043 = vld [vmem:[#allocation6 + $0x24] sm:$0xf]
    %v1044 = vld [vmem:[#allocation6 + $0x28] sm:$0xf]
    %v1045 = vld [vmem:[#allocation6 + $0x2c] sm:$0xf]
    %v1046 = vld [vmem:[#allocation6 + $0x30] sm:$0xf]
    %v1047 = vld [vmem:[#allocation6 + $0x34] sm:$0xf]
    %v1048 = vld [vmem:[#allocation6 + $0x38] sm:$0xf]
    %v1049 = vld [vmem:[#allocation6 + $0x3c] sm:$0xf]
    %v1050 = vld [vmem:[#allocation6 + $0x40] sm:$0xf]
    %v1051 = vld [vmem:[#allocation6 + $0x44] sm:$0xf]
    %v1052 = vld [vmem:[#allocation6 + $0x48] sm:$0xf]
    %v1053 = vld [vmem:[#allocation6 + $0x4c] sm:$0xf]
    %v1054 = vld [vmem:[#allocation6 + $0x50] sm:$0xf]
    %v1055 = vld [vmem:[#allocation6 + $0x54] sm:$0xf]
    %v1056 = vld [vmem:[#allocation6 + $0x58] sm:$0xf]
    %v1057 = vld [vmem:[#allocation6 + $0x5c] sm:$0xf]
    %v1058 = vld [vmem:[#allocation6 + $0x60] sm:$0xf]
    %v1059 = vld [vmem:[#allocation6 + $0x64] sm:$0xf]
    %v1060 = vld [vmem:[#allocation6 + $0x68] sm:$0xf]
    %v1061 = vld [vmem:[#allocation6 + $0x6c] sm:$0xf]
    %v1062 = vld [vmem:[#allocation6 + $0x70] sm:$0xf]
    %v1063 = vld [vmem:[#allocation6 + $0x74] sm:$0xf]
    %v1064 = vld [vmem:[#allocation6 + $0x78] sm:$0xf]
    %v1065 = vld [vmem:[#allocation6 + $0x7c] sm:$0xf]
    %v1066 = vld [vmem:[#allocation6 + $0x80] sm:$0xf]
    %v1067 = vld [vmem:[#allocation6 + $0x84] sm:$0xf]
    %v1068 = vld [vmem:[#allocation6 + $0x88] sm:$0xf]
    %v1069 = vld [vmem:[#allocation6 + $0x8c] sm:$0xf]
    %v1070 = vld [vmem:[#allocation6 + $0x90] sm:$0xf]
    %v1071 = vld [vmem:[#allocation6 + $0x94] sm:$0xf]
    %v1072 = vld [vmem:[#allocation6 + $0x98] sm:$0xf]
    %v1073 = vld [vmem:[#allocation6 + $0x9c] sm:$0xf]
    %v1074 = vld [vmem:[#allocation6 + $0xa0] sm:$0xf]
    %v1075 = vld [vmem:[#allocation6 + $0xa4] sm:$0xf]
    %v1076 = vld [vmem:[#allocation6 + $0xa8] sm:$0xf]
    %v1077 = vld [vmem:[#allocation6 + $0xac] sm:$0xf]
    %v1078 = vld [vmem:[#allocation6 + $0xb0] sm:$0xf]
    %v1079 = vld [vmem:[#allocation6 + $0xb4] sm:$0xf]
    %v1080 = vld [vmem:[#allocation6 + $0xb8] sm:$0xf]
    %v1081 = vld [vmem:[#allocation6 + $0xbc] sm:$0xf]
    %v1082 = vlaneseq
    %v1083 = vshrl.u32 %v1082, 7
    %v1084 = vsub.s32 2, %v1083
    %v1085 = vrot.slane %v76, %v1084
    %v1134 = vunpack.c.l.b16 %v1034
    %v1135 = vunpack.c.l.b16 %v1035
    %v1136 = vunpack.c.l.b16 %v1036
    %v1137 = vunpack.c.l.b16 %v1037
    %v1138 = vunpack.c.l.b16 %v1038
    %v1139 = vunpack.c.l.b16 %v1039
    %v1140 = vunpack.c.l.b16 %v1040
    %v1141 = vunpack.c.l.b16 %v1041
    %v1142 = vunpack.c.l.b16 %v1042
    %v1143 = vunpack.c.l.b16 %v1043
    %v1144 = vunpack.c.l.b16 %v1044
    %v1145 = vunpack.c.l.b16 %v1045
    %v1146 = vunpack.c.l.b16 %v1046
    %v1147 = vunpack.c.l.b16 %v1047
    %v1148 = vunpack.c.l.b16 %v1048
    %v1149 = vunpack.c.l.b16 %v1049
    %v1150 = vunpack.c.l.b16 %v1050
    %v1151 = vunpack.c.l.b16 %v1051
    %v1152 = vunpack.c.l.b16 %v1052
    %v1153 = vunpack.c.l.b16 %v1053
    %v1154 = vunpack.c.l.b16 %v1054
    %v1155 = vunpack.c.l.b16 %v1055
    %v1156 = vunpack.c.l.b16 %v1056
    %v1157 = vunpack.c.l.b16 %v1057
    %v1158 = vunpack.c.l.b16 %v1058
    %v1159 = vunpack.c.l.b16 %v1059
    %v1160 = vunpack.c.l.b16 %v1060
    %v1161 = vunpack.c.l.b16 %v1061
    %v1162 = vunpack.c.l.b16 %v1062
    %v1163 = vunpack.c.l.b16 %v1063
    %v1164 = vunpack.c.l.b16 %v1064
    %v1165 = vunpack.c.l.b16 %v1065
    %v1166 = vunpack.c.l.b16 %v1066
    %v1167 = vunpack.c.l.b16 %v1067
    %v1168 = vunpack.c.l.b16 %v1068
    %v1169 = vunpack.c.l.b16 %v1069
    %v1170 = vunpack.c.l.b16 %v1070
    %v1171 = vunpack.c.l.b16 %v1071
    %v1172 = vunpack.c.l.b16 %v1072
    %v1173 = vunpack.c.l.b16 %v1073
    %v1174 = vunpack.c.l.b16 %v1074
    %v1175 = vunpack.c.l.b16 %v1075
    %v1176 = vunpack.c.l.b16 %v1076
    %v1177 = vunpack.c.l.b16 %v1077
    %v1178 = vunpack.c.l.b16 %v1078
    %v1179 = vunpack.c.l.b16 %v1079
    %v1180 = vunpack.c.l.b16 %v1080
    %v1181 = vunpack.c.l.b16 %v1081
    %v1182 = vpack.c.b16 %v1135, %v1134
    %v1183 = vpack.c.b16 %v1137, %v1136
    %v1184 = vpack.c.b16 %v1139, %v1138
    %v1185 = vpack.c.b16 %v1141, %v1140
    %v1186 = vpack.c.b16 %v1143, %v1142
    %v1187 = vpack.c.b16 %v1145, %v1144
    %v1188 = vpack.c.b16 %v1147, %v1146
    %v1189 = vpack.c.b16 %v1149, %v1148
    %v1190 = vpack.c.b16 %v1151, %v1150
    %v1191 = vpack.c.b16 %v1153, %v1152
    %v1192 = vpack.c.b16 %v1155, %v1154
    %v1193 = vpack.c.b16 %v1157, %v1156
    %v1194 = vpack.c.b16 %v1159, %v1158
    %v1195 = vpack.c.b16 %v1161, %v1160
    %v1196 = vpack.c.b16 %v1163, %v1162
    %v1197 = vpack.c.b16 %v1165, %v1164
    %v1198 = vpack.c.b16 %v1167, %v1166
    %v1199 = vpack.c.b16 %v1169, %v1168
    %v1200 = vpack.c.b16 %v1171, %v1170
    %v1201 = vpack.c.b16 %v1173, %v1172
    %v1202 = vpack.c.b16 %v1175, %v1174
    %v1203 = vpack.c.b16 %v1177, %v1176
    %v1204 = vpack.c.b16 %v1179, %v1178
    %v1205 = vpack.c.b16 %v1181, %v1180
    %1230 = vmatprep.subr.bf16.mxu0 0
    %1231 = vmatpush1.bf16.msra.mxu0 %v1182
    %1232 = vmatprep.subr.bf16.mxu0 0
    %1233 = vmatpush1.bf16.msra.mxu0 %v1183
    %1234 = vmatprep.subr.bf16.mxu0 0
    %1235 = vmatpush1.bf16.msra.mxu0 %v1184
    %1236 = vmatprep.subr.bf16.mxu0 0
    %1237 = vmatpush1.bf16.msra.mxu0 %v1185
    %1238 = vmatprep.subr.bf16.mxu0 0
    %1239 = vmatpush1.bf16.msra.mxu0 %v1186
    %1240 = vmatprep.subr.bf16.mxu0 0
    %1241 = vmatpush1.bf16.msra.mxu0 %v1187
    %1242 = vmatprep.subr.bf16.mxu0 0
    %1243 = vmatpush1.bf16.msra.mxu0 %v1188
    %1244 = vmatprep.subr.bf16.mxu0 0
    %1245 = vmatpush1.bf16.msra.mxu0 %v1189
    %1246 = vmatprep.subr.bf16.mxu0 0
    %1247 = vmatpush1.bf16.msra.mxu0 %v1190
    %1248 = vmatprep.subr.bf16.mxu0 0
    %1249 = vmatpush1.bf16.msra.mxu0 %v1191
    %1250 = vmatprep.subr.bf16.mxu0 0
    %1251 = vmatpush1.bf16.msra.mxu0 %v1192
    %1252 = vmatprep.subr.bf16.mxu0 0
    %1253 = vmatpush1.bf16.msra.mxu0 %v1193
    %1254 = vmatprep.subr.bf16.mxu0 0
    %1255 = vmatpush1.bf16.msra.mxu0 %v1194
    %1256 = vmatprep.subr.bf16.mxu0 0
    %1257 = vmatpush1.bf16.msra.mxu0 %v1195
    %1258 = vmatprep.subr.bf16.mxu0 0
    %1259 = vmatpush1.bf16.msra.mxu0 %v1196
    %1260 = vmatprep.subr.bf16.mxu0 0
    %1261 = vmatpush1.bf16.msra.mxu0 %v1197
    %1262 = vmatprep.mubr.bf16.mxu0 %v1032
    %1263 = vmatmul.mubr.bf16.gmra.mrb[0].mxu0 %v1031
    %v1264 = vpop.f32.mrb[0].mxu0
    %v1265 = vadd.f32 %v1085, %v1264
    %v1266 = vpop.f32.mrb[0].mxu0
    %v1267 = vpop.f32.mrb[0].mxu0
    %v1268 = vpop.f32.mrb[0].mxu0
    %1269 = vdwg.mxu0
    %1270 = vmatprep.subr.bf16.mxu0 0
    %1271 = vmatpush1.bf16.msra.mxu0 %v1198
    %1272 = vmatprep.subr.bf16.mxu0 0
    %1273 = vmatpush1.bf16.msra.mxu0 %v1199
    %1274 = vmatprep.subr.bf16.mxu0 0
    %1275 = vmatpush1.bf16.msra.mxu0 %v1200
    %1276 = vmatprep.subr.bf16.mxu0 0
    %1277 = vmatpush1.bf16.msra.mxu0 %v1201
    %1278 = vmatprep.subr.bf16.mxu0 0
    %1279 = vmatpush1.bf16.msra.mxu0 %v1202
    %1280 = vmatprep.subr.bf16.mxu0 0
    %1281 = vmatpush1.bf16.msra.mxu0 %v1203
    %1282 = vmatprep.subr.bf16.mxu0 0
    %1283 = vmatpush1.bf16.msra.mxu0 %v1204
    %1284 = vmatprep.subr.bf16.mxu0 0
    %1285 = vmatpush1.bf16.msra.mxu0 %v1205
    %1286 = vmatprep.subr.bf16.mxu0 0
    %1287 = vmatpush1.bf16.msra.mxu0 0
    %1288 = vmatprep.subr.bf16.mxu0 0
    %1289 = vmatpush1.bf16.msra.mxu0 0
    %1290 = vmatprep.subr.bf16.mxu0 0
    %1291 = vmatpush1.bf16.msra.mxu0 0
    %1292 = vmatprep.subr.bf16.mxu0 0
    %1293 = vmatpush1.bf16.msra.mxu0 0
    %1294 = vmatprep.subr.bf16.mxu0 0
    %1295 = vmatpush1.bf16.msra.mxu0 0
    %1296 = vmatprep.subr.bf16.mxu0 0
    %1297 = vmatpush1.bf16.msra.mxu0 0
    %1298 = vmatprep.subr.bf16.mxu0 0
    %1299 = vmatpush1.bf16.msra.mxu0 0
    %1300 = vmatprep.subr.bf16.mxu0 0
    %1301 = vmatpush1.bf16.msra.mxu0 0
    %1302 = vmatprep.mubr.bf16.mxu0 0
    %1303 = vmatmul.mubr.bf16.gmra.mrb[0].mxu0 %v1033
    %v1304 = vpop.f32.mrb[0].mxu0
    %v1305 = vadd.f32 %v1265, %v1304
    %v1306 = vpop.f32.mrb[0].mxu0
    %v1307 = vpop.f32.mrb[0].mxu0
    %v1308 = vpop.f32.mrb[0].mxu0
    %1309 = vdwg.mxu0
    %1310 = vst [vmem:[%s5] sm:$0xff] %v1305
    // Predicated region
    $region38: #{actor_mlp_forward.1} parent=1 // pred_check
      _
    $region39: #{actor_mlp_forward.1} parent=1 // pred_check_branch
      %1312 = sbr.rel (0) target = $region41
    $region40: #{actor_mlp_forward.1} parent=1 // pred_region
      _
    $region41: #{actor_mlp_forward.1} parent=1 // pred_fallthru
      _
    // Predicated region
    $region42: #{actor_mlp_forward.1} parent=1 // pred_check
      _
    $region43: #{actor_mlp_forward.1} parent=1 // pred_check_branch
      %1314 = sbr.rel (0) target = $region45
    $region44: #{actor_mlp_forward.1} parent=1 // pred_region
      _
    $region45: #{actor_mlp_forward.1} parent=1 // pred_fallthru
      _
    %1315 = vsyncpa [#allocation3], 1
    %1316 = vsyncpa [#allocation5], 1
    %1317 = vsyncpa [#allocation8], 1

</llo_original>
